<compile_context>
chip_gen: v6e
topology: v6e:2x2x1
jax: 0.10.0
libtpu: 0.0.40
codegen_flags: <defaults>
</compile_context>

<pallas_src>
import functools

import numpy as np
import jax
import jax.numpy as jnp
from jax.experimental import pallas as pl
from jax.experimental.pallas import tpu as pltpu


# ----------------------------------------------------------------------------
# Kernel
# ----------------------------------------------------------------------------
def _encoder_kernel(x_ref, w1_ref, b1_ref, w2_ref, b2_ref, o_ref, *,
                    pack_out, bf16_epilogue):
    # In-kernel cast of the input tile to bf16 (hidden under the input DMA);
    # the caller-dtype x is DMA'd straight from HBM with no wrapper cast pass.
    x = x_ref[...]
    if x.dtype != w1_ref.dtype:
        x = x.astype(w1_ref.dtype)
    # Linear 1: bf16 x bf16 -> f32 accumulation on the MXU.
    h = jnp.dot(x, w1_ref[...], preferred_element_type=jnp.float32)
    if bf16_epilogue:
        # v6e/v7x: bf16 VPU/EUP -> bias-add + tanh in bf16, feeds the MXU directly.
        h = jnp.tanh(h.astype(jnp.bfloat16) + b1_ref[...].astype(jnp.bfloat16))
    else:
        # v5e has no bf16 VPU/EUP: keep the epilogue in f32, then cast for the MXU.
        h = jnp.tanh(h + b1_ref[...]).astype(w2_ref.dtype)
    # Linear 2: bf16 x bf16 -> f32 accumulation on the MXU, f32 bias add.
    out = jnp.dot(h, w2_ref[...], preferred_element_type=jnp.float32)
    out = out + b2_ref[...]
    if pack_out:
        # Fold 8 logical rows per packed row -> lane-dense (bb/8, 8*R >= 128)
        # slab: unmasked vst + dense writeback DMA.
        bb, r = out.shape
        out = out.reshape(bb // 8, 8 * r)
    o_ref[...] = out.astype(o_ref.dtype)


# ----------------------------------------------------------------------------
# pallas_call builder
# ----------------------------------------------------------------------------
def _build_encoder_call(b_pad, D, H, R, block_b, out_dtype, pack_out,
                        single_buffer_weights, bf16_epilogue, vmem_limit_bytes):
    # Grid-invariant weights/biases are single-buffered when supported (halves
    # their VMEM footprint, matters for large data_dim on v7x's 64 MiB VMEM).
    wkw = {"pipeline_mode": pl.Buffered(1)} if single_buffer_weights else {}
    in_specs = [
        pl.BlockSpec((block_b, D), lambda i: (i, 0)),        # x tile (pipelined)
        pl.BlockSpec((D, H), lambda i: (0, 0), **wkw),       # W1 (VMEM resident)
        pl.BlockSpec((1, H), lambda i: (0, 0), **wkw),       # b1
        pl.BlockSpec((H, R), lambda i: (0, 0), **wkw),       # W2
        pl.BlockSpec((1, R), lambda i: (0, 0), **wkw),       # b2
    ]
    if pack_out:
        out_shape = jax.ShapeDtypeStruct((b_pad // 8, 8 * R), out_dtype)
        out_spec = pl.BlockSpec((block_b // 8, 8 * R), lambda i: (i, 0))
    else:
        out_shape = jax.ShapeDtypeStruct((b_pad, R), out_dtype)
        out_spec = pl.BlockSpec((block_b, R), lambda i: (i, 0))
    # TODO(synk): on v7x, confirm both TensorCores are active with "parallel"
    #             (else switch the batch axis to pltpu.CORE_PARALLEL) and sweep
    #             pl.Buffered(3) on the x / output specs.
    return pl.pallas_call(
        functools.partial(_encoder_kernel, pack_out=pack_out,
                          bf16_epilogue=bf16_epilogue),
        out_shape=out_shape,
        grid_spec=pltpu.PrefetchScalarGridSpec(
            num_scalar_prefetch=0,
            grid=(pl.cdiv(b_pad, block_b),),
            in_specs=in_specs,
            out_specs=out_spec,
        ),
        compiler_params=pltpu.CompilerParams(
            dimension_semantics=("parallel",),
            vmem_limit_bytes=int(vmem_limit_bytes),
        ),
    )


@functools.lru_cache(maxsize=None)
def _get_encoder_call(b_pad, D, H, R, block_b, out_dtype, pack_out,
                      single_buf, bf16_epi, vmem_limit_bytes):
    # Compile-once per static configuration (jit caches on input avals).
    return jax.jit(_build_encoder_call(b_pad, D, H, R, block_b, out_dtype,
                                       pack_out, single_buf, bf16_epi,
                                       vmem_limit_bytes))


# ----------------------------------------------------------------------------
# Hardware queries + one-time feature probe
# ----------------------------------------------------------------------------
def _device_kind():
    try:
        return jax.devices()[0].device_kind.lower()
    except Exception:
        return ""


def _physical_vmem_bytes():
    try:
        return int(pltpu.get_tpu_info().vmem_capacity_bytes)
    except Exception:
        return 64 << 20  # conservative: v7x per-TensorCore VMEM


def _bf16_epilogue_ok(kind):
    # bf16 VPU/EUP only on v6e and later; keep f32 epilogue on v2-v5 / unknown.
    return bool(kind) and not any(t in kind for t in ("v2", "v3", "v4", "v5"))


@functools.lru_cache(maxsize=None)
def _select_features(kind):
    """One-time per-process probe (tiny shapes) of optional Mosaic features.

    Returns (pack_out, single_buffer_weights, bf16_epilogue).  Replaces the old
    per-call try/except + block_until_ready fallback, which serialized dispatch
    and could silently trigger up to 3 compiles per call.
    """
    epi = _bf16_epilogue_ok(kind)

    def ok(pack, buf1, bf16_epi):
        try:
            x = jnp.zeros((64, 8), jnp.float32)
            w1 = jnp.zeros((8, 128), jnp.bfloat16)
            b1 = jnp.zeros((1, 128), jnp.float32)
            w2 = jnp.zeros((128, 16), jnp.bfloat16)
            b2 = jnp.zeros((1, 16), jnp.float32)
            out = _build_encoder_call(64, 8, 128, 16, 64, np.dtype(np.float32),
                                      pack, buf1, bf16_epi,
                                      32 * 1024 * 1024)(x, w1, b1, w2, b2)
            jax.block_until_ready(out)
            return True
        except Exception:
            return False

    combos = [(True, True, epi), (True, False, epi), (False, False, epi)]
    if epi:
        combos.append((False, False, False))
    for combo in combos:
        if ok(*combo):
            return combo
    return (False, False, False)


# ----------------------------------------------------------------------------
# Forward wrapper
# ----------------------------------------------------------------------------
def encoder_forward(x, w1, b1, w2, b2, *, block_b=None, vmem_limit_bytes=None,
                    out_dtype=jnp.float32):
    """x: [B, D] (f32 or bf16). Returns [B, rep_dim] in out_dtype (default f32).

    Same math as the PyTorch module: tanh(x @ W1 + b1) @ W2 + b2, with bf16
    storage of x / W1 / W2 feeding the MXU and f32 accumulation.  Pass
    out_dtype=jnp.bfloat16 to halve output writeback traffic if acceptable.
    """
    B, D = x.shape
    H = w1.shape[-1]
    R = w2.shape[-1]
    out_dtype = np.dtype(out_dtype)

    # Weights to bf16 (tiny, grid-invariant); biases stay f32 in HBM.
    w1_16 = w1.astype(jnp.bfloat16)
    w2_16 = w2.astype(jnp.bfloat16)
    b1f = jnp.asarray(b1, jnp.float32).reshape(1, H)
    b2f = jnp.asarray(b2, jnp.float32).reshape(1, R)

    # x stays in its caller dtype -- no wrapper-side cast pass.  Pad the batch
    # only when it is not already a multiple of 8 (sublane granularity).
    b_pad = ((B + 7) // 8) * 8
    x_in = x if b_pad == B else jnp.pad(x, ((0, b_pad - B), (0, 0)))

    kind = _device_kind()
    pack_out, single_buf, bf16_epi = _select_features(kind)
    pack_out = pack_out and (8 * R) % 128 == 0  # lane-dense slab needs R % 16 == 0

    # Generation-aware scoped-VMEM limit: 3/4 of physical VMEM, capped at 64 MiB
    # (-> ~48 MiB on v7x's 64 MiB/TC, 64 MiB on v5e/v6e's 128 MiB).
    if vmem_limit_bytes is None:
        vmem_limit_bytes = min(64 << 20, (_physical_vmem_bytes() * 3) // 4)
    vmem_limit_bytes = int(vmem_limit_bytes)

    x_bytes = np.dtype(x.dtype).itemsize
    o_bytes = out_dtype.itemsize

    # Batch tile: auto-size to ~2 MiB of input DMA per grid step (clamped to
    # [512, 4096]) so the ~0.35us per-step overhead amortizes; then cap by the
    # VMEM budget: double-buffered x (caller dtype) + in-kernel bf16 copy,
    # f32 hidden activations, double-buffered output, resident weights.
    # TODO(synk): for very large data_dim, add a K (reduction) grid axis over D
    #             with an f32 VMEM accumulator instead of keeping W1 resident.
    if block_b is None:
        block_b = max(512, min(4096, (2 << 20) // max(D * x_bytes, 1)))
    block_b = max(64, (int(block_b) // 64) * 64)
    n_wbuf = 1 if single_buf else 2
    weight_bytes = n_wbuf * ((D * H + H * R) * 2 + (H + R) * 4)
    row_bytes = 2 * D * x_bytes + 2 * D + 4 * H + 2 * R * o_bytes
    budget = (vmem_limit_bytes * 3) // 4
    max_rows = max(64, ((budget - weight_bytes) // max(row_bytes, 1)) // 64 * 64)
    block_b = min(block_b, max_rows)
    if b_pad <= block_b:
        block_b = b_pad  # single full-extent tile (always a legal block shape)

    call = _get_encoder_call(b_pad, D, H, R, block_b, out_dtype, pack_out,
                             single_buf, bf16_epi, vmem_limit_bytes)
    out = call(x_in, w1_16, b1f, w2_16, b2f)
    if pack_out:
        # Row-major unfold of the packed slab -> (b_pad, R); free in XLA.
        out = out.reshape(b_pad, R)
    return out if b_pad == B else out[:B]


# ----------------------------------------------------------------------------
# Parameter init (PyTorch-style uniform(-1/sqrt(fan_in), 1/sqrt(fan_in)))
# ----------------------------------------------------------------------------
def init_encoder_params(key, data_dim, rep_dim=16, hidden=128):
    k1, k2, k3, k4 = jax.random.split(key, 4)
    bound1 = 1.0 / jnp.sqrt(data_dim)
    bound2 = 1.0 / jnp.sqrt(hidden)
    # Stored as [in, out] (transposed vs. PyTorch's [out, in]).
    w1 = jax.random.uniform(k1, (data_dim, hidden), jnp.float32, -bound1, bound1)
    b1 = jax.random.uniform(k2, (1, hidden), jnp.float32, -bound1, bound1)
    w2 = jax.random.uniform(k3, (hidden, rep_dim), jnp.float32, -bound2, bound2)
    b2 = jax.random.uniform(k4, (1, rep_dim), jnp.float32, -bound2, bound2)
    return w1, b1, w2, b2


if __name__ == "__main__":
    key = jax.random.PRNGKey(0)
    k_x, k_p, k_x2 = jax.random.split(key, 3)

    batch, data_dim, rep_dim, hidden = 32, 32, 16, 128
    x = jax.random.normal(k_x, (batch, data_dim), jnp.float32)
    w1, b1, w2, b2 = init_encoder_params(k_p, data_dim, rep_dim, hidden)

    out = jax.block_until_ready(encoder_forward(x, w1, b1, w2, b2))
    assert out.shape == (batch, rep_dim)

    def ref_bf16(xa):
        xb, w1b, w2b = (t.astype(jnp.bfloat16) for t in (xa, w1, w2))
        h = jnp.tanh(jnp.dot(xb, w1b, preferred_element_type=jnp.float32) + b1)
        return jnp.dot(h.astype(jnp.bfloat16), w2b,
                       preferred_element_type=jnp.float32) + b2

    def ref_f32(xa):
        return jnp.tanh(xa @ w1 + b1) @ w2 + b2

    # Matched-storage reference (bf16 x/W, f32 accumulation).
    assert jnp.allclose(out, ref_bf16(x), atol=5e-2, rtol=5e-2)
    # Loose sanity check against the pure-f32 math of the PyTorch module.
    assert jnp.allclose(out, ref_f32(x), atol=1e-1, rtol=1e-1)

    # Ragged-tail / multi-step-grid check: B=200 with block_b=64 -> 4 grid steps
    # with an 8-row partial last block; exercises masked packed writeback.
    x2 = jax.random.normal(k_x2, (200, data_dim), jnp.float32)
    out2 = jax.block_until_ready(
        encoder_forward(x2, w1, b1, w2, b2, block_b=64))
    assert out2.shape == (200, rep_dim)
    assert jnp.allclose(out2, ref_f32(x2), atol=1e-1, rtol=1e-1)

    print("KERNEL_OK")
</pallas_src>

<mosaic_0001>
module attributes {stable_mosaic.version = 11 : i64} {
  func.func @_encoder_kernel(%arg0: i32, %arg1: memref<64x8xf32, #tpu.memory_space<vmem>>, %arg2: memref<8x128xbf16, #tpu.memory_space<vmem>>, %arg3: memref<1x128xf32, #tpu.memory_space<vmem>>, %arg4: memref<128x16xbf16, #tpu.memory_space<vmem>>, %arg5: memref<1x16xf32, #tpu.memory_space<vmem>>, %arg6: memref<8x128xf32, #tpu.memory_space<vmem>>) attributes {dimension_semantics = [#tpu.dimension_semantics<parallel>], iteration_bounds = array<i64: 1>, scalar_prefetch = 0 : i64, scratch_operands = 0 : i64, tpu.core_type = #tpu.core_type<tc>, window_params = [{transform_indices = @transform_0, window_bounds = array<i64: 64, 8>}, {pipeline_mode = #tpu.pipeline_mode<synchronous>, transform_indices = @transform_1, window_bounds = array<i64: 8, 128>}, {pipeline_mode = #tpu.pipeline_mode<synchronous>, transform_indices = @transform_2, window_bounds = array<i64: 1, 128>}, {pipeline_mode = #tpu.pipeline_mode<synchronous>, transform_indices = @transform_3, window_bounds = array<i64: 128, 16>}, {pipeline_mode = #tpu.pipeline_mode<synchronous>, transform_indices = @transform_4, window_bounds = array<i64: 1, 16>}, {transform_indices = @transform_5, window_bounds = array<i64: 8, 128>}]} {
    %c0 = arith.constant 0 : index
    %c0_0 = arith.constant 0 : index
    %0 = vector.load %arg1[%c0, %c0_0] : memref<64x8xf32, #tpu.memory_space<vmem>>, vector<64x8xf32>
    %1 = arith.truncf %0 : vector<64x8xf32> to vector<64x8xbf16>
    %c0_1 = arith.constant 0 : index
    %c0_2 = arith.constant 0 : index
    %2 = vector.load %arg2[%c0_1, %c0_2] : memref<8x128xbf16, #tpu.memory_space<vmem>>, vector<8x128xbf16>
    %cst = arith.constant dense<0.000000e+00> : vector<64x128xf32>
    %3 = tpu.matmul %1, %2, %cst {dimension_numbers = #tpu.dot_dimension_numbers<[1], [0], [0], [1], [0, 0, 1, 1], [], []>} : vector<64x8xbf16>, vector<8x128xbf16>, vector<64x128xf32> -> vector<64x128xf32>
    %4 = arith.truncf %3 : vector<64x128xf32> to vector<64x128xbf16>
    %c0_3 = arith.constant 0 : index
    %c0_4 = arith.constant 0 : index
    %5 = vector.load %arg3[%c0_3, %c0_4] : memref<1x128xf32, #tpu.memory_space<vmem>>, vector<1x128xf32>
    %6 = arith.truncf %5 : vector<1x128xf32> to vector<1x128xbf16>
    %7 = vector.broadcast %6 : vector<1x128xbf16> to vector<64x128xbf16>
    %8 = arith.addf %4, %7 : vector<64x128xbf16>
    %9 = math.tanh %8 : vector<64x128xbf16>
    %c0_5 = arith.constant 0 : index
    %c0_6 = arith.constant 0 : index
    %10 = vector.load %arg4[%c0_5, %c0_6] : memref<128x16xbf16, #tpu.memory_space<vmem>>, vector<128x16xbf16>
    %cst_7 = arith.constant dense<0.000000e+00> : vector<64x16xf32>
    %11 = tpu.matmul %9, %10, %cst_7 {dimension_numbers = #tpu.dot_dimension_numbers<[1], [0], [0], [1], [0, 0, 1, 1], [], []>} : vector<64x128xbf16>, vector<128x16xbf16>, vector<64x16xf32> -> vector<64x16xf32>
    %c0_8 = arith.constant 0 : index
    %c0_9 = arith.constant 0 : index
    %12 = vector.load %arg5[%c0_8, %c0_9] : memref<1x16xf32, #tpu.memory_space<vmem>>, vector<1x16xf32>
    %13 = vector.broadcast %12 : vector<1x16xf32> to vector<64x16xf32>
    %14 = arith.addf %11, %13 : vector<64x16xf32>
    %15 = vector.shape_cast %14 : vector<64x16xf32> to vector<8x128xf32>
    %c0_10 = arith.constant 0 : index
    %c0_11 = arith.constant 0 : index
    %16 = vector.load %arg6[%c0_10, %c0_11] : memref<8x128xf32, #tpu.memory_space<vmem>>, vector<8x128xf32>
    tpu.vector_store %arg6[%c0_10, %c0_11], %15 {strides = array<i32>} : memref<8x128xf32, #tpu.memory_space<vmem>>, vector<8x128xf32>,
    return
  }
  func.func @transform_0(%arg0: i32) -> (i32, i32) {
    %c0_i32 = arith.constant 0 : i32
    %c0_i32_0 = arith.constant 0 : i32
    return %arg0, %c0_i32 : i32, i32
  }
  func.func @transform_1(%arg0: i32) -> (i32, i32) {
    %c0_i32 = arith.constant 0 : i32
    %c0_i32_0 = arith.constant 0 : i32
    %c0_i32_1 = arith.constant 0 : i32
    return %c0_i32, %c0_i32_0 : i32, i32
  }
  func.func @transform_2(%arg0: i32) -> (i32, i32) {
    %c0_i32 = arith.constant 0 : i32
    %c0_i32_0 = arith.constant 0 : i32
    %c0_i32_1 = arith.constant 0 : i32
    return %c0_i32, %c0_i32_0 : i32, i32
  }
  func.func @transform_3(%arg0: i32) -> (i32, i32) {
    %c0_i32 = arith.constant 0 : i32
    %c0_i32_0 = arith.constant 0 : i32
    %c0_i32_1 = arith.constant 0 : i32
    return %c0_i32, %c0_i32_0 : i32, i32
  }
  func.func @transform_4(%arg0: i32) -> (i32, i32) {
    %c0_i32 = arith.constant 0 : i32
    %c0_i32_0 = arith.constant 0 : i32
    %c0_i32_1 = arith.constant 0 : i32
    return %c0_i32, %c0_i32_0 : i32, i32
  }
  func.func @transform_5(%arg0: i32) -> (i32, i32) {
    %c0_i32 = arith.constant 0 : i32
    %c0_i32_0 = arith.constant 0 : i32
    return %arg0, %c0_i32 : i32, i32
  }
}

module attributes {stable_mosaic.version = 11 : i64} {
  func.func @_encoder_kernel(%arg0: i32, %arg1: memref<64x8xf32, #tpu.memory_space<vmem>>, %arg2: memref<8x128xbf16, #tpu.memory_space<vmem>>, %arg3: memref<1x128xf32, #tpu.memory_space<vmem>>, %arg4: memref<128x16xbf16, #tpu.memory_space<vmem>>, %arg5: memref<1x16xf32, #tpu.memory_space<vmem>>, %arg6: memref<8x128xf32, #tpu.memory_space<vmem>>) attributes {dimension_semantics = [#tpu.dimension_semantics<parallel>], iteration_bounds = array<i64: 1>, scalar_prefetch = 0 : i64, scratch_operands = 0 : i64, tpu.core_type = #tpu.core_type<tc>, window_params = [{transform_indices = @transform_0, window_bounds = array<i64: 64, 8>}, {pipeline_mode = #tpu.pipeline_mode<synchronous>, transform_indices = @transform_1, window_bounds = array<i64: 8, 128>}, {pipeline_mode = #tpu.pipeline_mode<synchronous>, transform_indices = @transform_2, window_bounds = array<i64: 1, 128>}, {pipeline_mode = #tpu.pipeline_mode<synchronous>, transform_indices = @transform_3, window_bounds = array<i64: 128, 16>}, {pipeline_mode = #tpu.pipeline_mode<synchronous>, transform_indices = @transform_4, window_bounds = array<i64: 1, 16>}, {transform_indices = @transform_5, window_bounds = array<i64: 8, 128>}]} {
    %c0 = arith.constant 0 : index
    %c0_0 = arith.constant 0 : index
    %0 = vector.load %arg1[%c0, %c0_0] : memref<64x8xf32, #tpu.memory_space<vmem>>, vector<64x8xf32>
    %1 = arith.truncf %0 : vector<64x8xf32> to vector<64x8xbf16>
    %c0_1 = arith.constant 0 : index
    %c0_2 = arith.constant 0 : index
    %2 = vector.load %arg2[%c0_1, %c0_2] : memref<8x128xbf16, #tpu.memory_space<vmem>>, vector<8x128xbf16>
    %cst = arith.constant dense<0.000000e+00> : vector<64x128xf32>
    %3 = tpu.matmul %1, %2, %cst {dimension_numbers = #tpu.dot_dimension_numbers<[1], [0], [0], [1], [0, 0, 1, 1], [], []>} : vector<64x8xbf16>, vector<8x128xbf16>, vector<64x128xf32> -> vector<64x128xf32>
    %4 = arith.truncf %3 : vector<64x128xf32> to vector<64x128xbf16>
    %c0_3 = arith.constant 0 : index
    %c0_4 = arith.constant 0 : index
    %5 = vector.load %arg3[%c0_3, %c0_4] : memref<1x128xf32, #tpu.memory_space<vmem>>, vector<1x128xf32>
    %6 = arith.truncf %5 : vector<1x128xf32> to vector<1x128xbf16>
    %7 = vector.broadcast %6 : vector<1x128xbf16> to vector<64x128xbf16>
    %8 = arith.addf %4, %7 : vector<64x128xbf16>
    %9 = math.tanh %8 : vector<64x128xbf16>
    %c0_5 = arith.constant 0 : index
    %c0_6 = arith.constant 0 : index
    %10 = vector.load %arg4[%c0_5, %c0_6] : memref<128x16xbf16, #tpu.memory_space<vmem>>, vector<128x16xbf16>
    %cst_7 = arith.constant dense<0.000000e+00> : vector<64x16xf32>
    %11 = tpu.matmul %9, %10, %cst_7 {dimension_numbers = #tpu.dot_dimension_numbers<[1], [0], [0], [1], [0, 0, 1, 1], [], []>} : vector<64x128xbf16>, vector<128x16xbf16>, vector<64x16xf32> -> vector<64x16xf32>
    %c0_8 = arith.constant 0 : index
    %c0_9 = arith.constant 0 : index
    %12 = vector.load %arg5[%c0_8, %c0_9] : memref<1x16xf32, #tpu.memory_space<vmem>>, vector<1x16xf32>
    %13 = vector.broadcast %12 : vector<1x16xf32> to vector<64x16xf32>
    %14 = arith.addf %11, %13 : vector<64x16xf32>
    %15 = vector.shape_cast %14 : vector<64x16xf32> to vector<8x128xf32>
    %c0_10 = arith.constant 0 : index
    %c0_11 = arith.constant 0 : index
    %16 = vector.load %arg6[%c0_10, %c0_11] : memref<8x128xf32, #tpu.memory_space<vmem>>, vector<8x128xf32>
    tpu.vector_store %arg6[%c0_10, %c0_11], %15 {strides = array<i32>} : memref<8x128xf32, #tpu.memory_space<vmem>>, vector<8x128xf32>,
    return
  }
  func.func @transform_0(%arg0: i32) -> (i32, i32) {
    %c0_i32 = arith.constant 0 : i32
    %c0_i32_0 = arith.constant 0 : i32
    return %arg0, %c0_i32 : i32, i32
  }
  func.func @transform_1(%arg0: i32) -> (i32, i32) {
    %c0_i32 = arith.constant 0 : i32
    %c0_i32_0 = arith.constant 0 : i32
    %c0_i32_1 = arith.constant 0 : i32
    return %c0_i32, %c0_i32_0 : i32, i32
  }
  func.func @transform_2(%arg0: i32) -> (i32, i32) {
    %c0_i32 = arith.constant 0 : i32
    %c0_i32_0 = arith.constant 0 : i32
    %c0_i32_1 = arith.constant 0 : i32
    return %c0_i32, %c0_i32_0 : i32, i32
  }
  func.func @transform_3(%arg0: i32) -> (i32, i32) {
    %c0_i32 = arith.constant 0 : i32
    %c0_i32_0 = arith.constant 0 : i32
    %c0_i32_1 = arith.constant 0 : i32
    return %c0_i32, %c0_i32_0 : i32, i32
  }
  func.func @transform_4(%arg0: i32) -> (i32, i32) {
    %c0_i32 = arith.constant 0 : i32
    %c0_i32_0 = arith.constant 0 : i32
    %c0_i32_1 = arith.constant 0 : i32
    return %c0_i32, %c0_i32_0 : i32, i32
  }
  func.func @transform_5(%arg0: i32) -> (i32, i32) {
    %c0_i32 = arith.constant 0 : i32
    %c0_i32_0 = arith.constant 0 : i32
    return %arg0, %c0_i32 : i32, i32
  }
}

module attributes {stable_mosaic.version = 11 : i64} {
  func.func @_encoder_kernel(%arg0: i32, %arg1: memref<64x8xf32, #tpu.memory_space<vmem>>, %arg2: memref<8x128xbf16, #tpu.memory_space<vmem>>, %arg3: memref<1x128xf32, #tpu.memory_space<vmem>>, %arg4: memref<128x16xbf16, #tpu.memory_space<vmem>>, %arg5: memref<1x16xf32, #tpu.memory_space<vmem>>, %arg6: memref<64x16xf32, #tpu.memory_space<vmem>>) attributes {dimension_semantics = [#tpu.dimension_semantics<parallel>], iteration_bounds = array<i64: 1>, scalar_prefetch = 0 : i64, scratch_operands = 0 : i64, tpu.core_type = #tpu.core_type<tc>, window_params = [{transform_indices = @transform_0, window_bounds = array<i64: 64, 8>}, {pipeline_mode = #tpu.pipeline_mode<synchronous>, transform_indices = @transform_1, window_bounds = array<i64: 8, 128>}, {pipeline_mode = #tpu.pipeline_mode<synchronous>, transform_indices = @transform_2, window_bounds = array<i64: 1, 128>}, {pipeline_mode = #tpu.pipeline_mode<synchronous>, transform_indices = @transform_3, window_bounds = array<i64: 128, 16>}, {pipeline_mode = #tpu.pipeline_mode<synchronous>, transform_indices = @transform_4, window_bounds = array<i64: 1, 16>}, {transform_indices = @transform_5, window_bounds = array<i64: 64, 16>}]} {
    %c0 = arith.constant 0 : index
    %c0_0 = arith.constant 0 : index
    %0 = vector.load %arg1[%c0, %c0_0] : memref<64x8xf32, #tpu.memory_space<vmem>>, vector<64x8xf32>
    %1 = arith.truncf %0 : vector<64x8xf32> to vector<64x8xbf16>
    %c0_1 = arith.constant 0 : index
    %c0_2 = arith.constant 0 : index
    %2 = vector.load %arg2[%c0_1, %c0_2] : memref<8x128xbf16, #tpu.memory_space<vmem>>, vector<8x128xbf16>
    %cst = arith.constant dense<0.000000e+00> : vector<64x128xf32>
    %3 = tpu.matmul %1, %2, %cst {dimension_numbers = #tpu.dot_dimension_numbers<[1], [0], [0], [1], [0, 0, 1, 1], [], []>} : vector<64x8xbf16>, vector<8x128xbf16>, vector<64x128xf32> -> vector<64x128xf32>
    %4 = arith.truncf %3 : vector<64x128xf32> to vector<64x128xbf16>
    %c0_3 = arith.constant 0 : index
    %c0_4 = arith.constant 0 : index
    %5 = vector.load %arg3[%c0_3, %c0_4] : memref<1x128xf32, #tpu.memory_space<vmem>>, vector<1x128xf32>
    %6 = arith.truncf %5 : vector<1x128xf32> to vector<1x128xbf16>
    %7 = vector.broadcast %6 : vector<1x128xbf16> to vector<64x128xbf16>
    %8 = arith.addf %4, %7 : vector<64x128xbf16>
    %9 = math.tanh %8 : vector<64x128xbf16>
    %c0_5 = arith.constant 0 : index
    %c0_6 = arith.constant 0 : index
    %10 = vector.load %arg4[%c0_5, %c0_6] : memref<128x16xbf16, #tpu.memory_space<vmem>>, vector<128x16xbf16>
    %cst_7 = arith.constant dense<0.000000e+00> : vector<64x16xf32>
    %11 = tpu.matmul %9, %10, %cst_7 {dimension_numbers = #tpu.dot_dimension_numbers<[1], [0], [0], [1], [0, 0, 1, 1], [], []>} : vector<64x128xbf16>, vector<128x16xbf16>, vector<64x16xf32> -> vector<64x16xf32>
    %c0_8 = arith.constant 0 : index
    %c0_9 = arith.constant 0 : index
    %12 = vector.load %arg5[%c0_8, %c0_9] : memref<1x16xf32, #tpu.memory_space<vmem>>, vector<1x16xf32>
    %13 = vector.broadcast %12 : vector<1x16xf32> to vector<64x16xf32>
    %14 = arith.addf %11, %13 : vector<64x16xf32>
    %c0_10 = arith.constant 0 : index
    %c0_11 = arith.constant 0 : index
    %15 = vector.load %arg6[%c0_10, %c0_11] : memref<64x16xf32, #tpu.memory_space<vmem>>, vector<64x16xf32>
    tpu.vector_store %arg6[%c0_10, %c0_11], %14 {strides = array<i32>} : memref<64x16xf32, #tpu.memory_space<vmem>>, vector<64x16xf32>,
    return
  }
  func.func @transform_0(%arg0: i32) -> (i32, i32) {
    %c0_i32 = arith.constant 0 : i32
    %c0_i32_0 = arith.constant 0 : i32
    return %arg0, %c0_i32 : i32, i32
  }
  func.func @transform_1(%arg0: i32) -> (i32, i32) {
    %c0_i32 = arith.constant 0 : i32
    %c0_i32_0 = arith.constant 0 : i32
    %c0_i32_1 = arith.constant 0 : i32
    return %c0_i32, %c0_i32_0 : i32, i32
  }
  func.func @transform_2(%arg0: i32) -> (i32, i32) {
    %c0_i32 = arith.constant 0 : i32
    %c0_i32_0 = arith.constant 0 : i32
    %c0_i32_1 = arith.constant 0 : i32
    return %c0_i32, %c0_i32_0 : i32, i32
  }
  func.func @transform_3(%arg0: i32) -> (i32, i32) {
    %c0_i32 = arith.constant 0 : i32
    %c0_i32_0 = arith.constant 0 : i32
    %c0_i32_1 = arith.constant 0 : i32
    return %c0_i32, %c0_i32_0 : i32, i32
  }
  func.func @transform_4(%arg0: i32) -> (i32, i32) {
    %c0_i32 = arith.constant 0 : i32
    %c0_i32_0 = arith.constant 0 : i32
    %c0_i32_1 = arith.constant 0 : i32
    return %c0_i32, %c0_i32_0 : i32, i32
  }
  func.func @transform_5(%arg0: i32) -> (i32, i32) {
    %c0_i32 = arith.constant 0 : i32
    %c0_i32_0 = arith.constant 0 : i32
    return %arg0, %c0_i32 : i32, i32
  }
}

module attributes {stable_mosaic.version = 11 : i64} {
  func.func @_encoder_kernel(%arg0: i32, %arg1: memref<64x8xf32, #tpu.memory_space<vmem>>, %arg2: memref<8x128xbf16, #tpu.memory_space<vmem>>, %arg3: memref<1x128xf32, #tpu.memory_space<vmem>>, %arg4: memref<128x16xbf16, #tpu.memory_space<vmem>>, %arg5: memref<1x16xf32, #tpu.memory_space<vmem>>, %arg6: memref<64x16xf32, #tpu.memory_space<vmem>>) attributes {dimension_semantics = [#tpu.dimension_semantics<parallel>], iteration_bounds = array<i64: 1>, scalar_prefetch = 0 : i64, scratch_operands = 0 : i64, tpu.core_type = #tpu.core_type<tc>, window_params = [{transform_indices = @transform_0, window_bounds = array<i64: 64, 8>}, {pipeline_mode = #tpu.pipeline_mode<synchronous>, transform_indices = @transform_1, window_bounds = array<i64: 8, 128>}, {pipeline_mode = #tpu.pipeline_mode<synchronous>, transform_indices = @transform_2, window_bounds = array<i64: 1, 128>}, {pipeline_mode = #tpu.pipeline_mode<synchronous>, transform_indices = @transform_3, window_bounds = array<i64: 128, 16>}, {pipeline_mode = #tpu.pipeline_mode<synchronous>, transform_indices = @transform_4, window_bounds = array<i64: 1, 16>}, {transform_indices = @transform_5, window_bounds = array<i64: 64, 16>}]} {
    %c0 = arith.constant 0 : index
    %c0_0 = arith.constant 0 : index
    %0 = vector.load %arg1[%c0, %c0_0] : memref<64x8xf32, #tpu.memory_space<vmem>>, vector<64x8xf32>
    %1 = arith.truncf %0 : vector<64x8xf32> to vector<64x8xbf16>
    %c0_1 = arith.constant 0 : index
    %c0_2 = arith.constant 0 : index
    %2 = vector.load %arg2[%c0_1, %c0_2] : memref<8x128xbf16, #tpu.memory_space<vmem>>, vector<8x128xbf16>
    %cst = arith.constant dense<0.000000e+00> : vector<64x128xf32>
    %3 = tpu.matmul %1, %2, %cst {dimension_numbers = #tpu.dot_dimension_numbers<[1], [0], [0], [1], [0, 0, 1, 1], [], []>} : vector<64x8xbf16>, vector<8x128xbf16>, vector<64x128xf32> -> vector<64x128xf32>
    %c0_3 = arith.constant 0 : index
    %c0_4 = arith.constant 0 : index
    %4 = vector.load %arg3[%c0_3, %c0_4] : memref<1x128xf32, #tpu.memory_space<vmem>>, vector<1x128xf32>
    %5 = vector.broadcast %4 : vector<1x128xf32> to vector<64x128xf32>
    %6 = arith.addf %3, %5 : vector<64x128xf32>
    %7 = math.tanh %6 : vector<64x128xf32>
    %8 = arith.truncf %7 : vector<64x128xf32> to vector<64x128xbf16>
    %c0_5 = arith.constant 0 : index
    %c0_6 = arith.constant 0 : index
    %9 = vector.load %arg4[%c0_5, %c0_6] : memref<128x16xbf16, #tpu.memory_space<vmem>>, vector<128x16xbf16>
    %cst_7 = arith.constant dense<0.000000e+00> : vector<64x16xf32>
    %10 = tpu.matmul %8, %9, %cst_7 {dimension_numbers = #tpu.dot_dimension_numbers<[1], [0], [0], [1], [0, 0, 1, 1], [], []>} : vector<64x128xbf16>, vector<128x16xbf16>, vector<64x16xf32> -> vector<64x16xf32>
    %c0_8 = arith.constant 0 : index
    %c0_9 = arith.constant 0 : index
    %11 = vector.load %arg5[%c0_8, %c0_9] : memref<1x16xf32, #tpu.memory_space<vmem>>, vector<1x16xf32>
    %12 = vector.broadcast %11 : vector<1x16xf32> to vector<64x16xf32>
    %13 = arith.addf %10, %12 : vector<64x16xf32>
    %c0_10 = arith.constant 0 : index
    %c0_11 = arith.constant 0 : index
    %14 = vector.load %arg6[%c0_10, %c0_11] : memref<64x16xf32, #tpu.memory_space<vmem>>, vector<64x16xf32>
    tpu.vector_store %arg6[%c0_10, %c0_11], %13 {strides = array<i32>} : memref<64x16xf32, #tpu.memory_space<vmem>>, vector<64x16xf32>,
    return
  }
  func.func @transform_0(%arg0: i32) -> (i32, i32) {
    %c0_i32 = arith.constant 0 : i32
    %c0_i32_0 = arith.constant 0 : i32
    return %arg0, %c0_i32 : i32, i32
  }
  func.func @transform_1(%arg0: i32) -> (i32, i32) {
    %c0_i32 = arith.constant 0 : i32
    %c0_i32_0 = arith.constant 0 : i32
    %c0_i32_1 = arith.constant 0 : i32
    return %c0_i32, %c0_i32_0 : i32, i32
  }
  func.func @transform_2(%arg0: i32) -> (i32, i32) {
    %c0_i32 = arith.constant 0 : i32
    %c0_i32_0 = arith.constant 0 : i32
    %c0_i32_1 = arith.constant 0 : i32
    return %c0_i32, %c0_i32_0 : i32, i32
  }
  func.func @transform_3(%arg0: i32) -> (i32, i32) {
    %c0_i32 = arith.constant 0 : i32
    %c0_i32_0 = arith.constant 0 : i32
    %c0_i32_1 = arith.constant 0 : i32
    return %c0_i32, %c0_i32_0 : i32, i32
  }
  func.func @transform_4(%arg0: i32) -> (i32, i32) {
    %c0_i32 = arith.constant 0 : i32
    %c0_i32_0 = arith.constant 0 : i32
    %c0_i32_1 = arith.constant 0 : i32
    return %c0_i32, %c0_i32_0 : i32, i32
  }
  func.func @transform_5(%arg0: i32) -> (i32, i32) {
    %c0_i32 = arith.constant 0 : i32
    %c0_i32_0 = arith.constant 0 : i32
    return %arg0, %c0_i32 : i32, i32
  }
}

module attributes {stable_mosaic.version = 11 : i64} {
  func.func @_encoder_kernel(%arg0: i32, %arg1: memref<32x32xf32, #tpu.memory_space<vmem>>, %arg2: memref<32x128xbf16, #tpu.memory_space<vmem>>, %arg3: memref<1x128xf32, #tpu.memory_space<vmem>>, %arg4: memref<128x16xbf16, #tpu.memory_space<vmem>>, %arg5: memref<1x16xf32, #tpu.memory_space<vmem>>, %arg6: memref<32x16xf32, #tpu.memory_space<vmem>>) attributes {dimension_semantics = [#tpu.dimension_semantics<parallel>], iteration_bounds = array<i64: 1>, scalar_prefetch = 0 : i64, scratch_operands = 0 : i64, tpu.core_type = #tpu.core_type<tc>, window_params = [{transform_indices = @transform_0, window_bounds = array<i64: 32, 32>}, {pipeline_mode = #tpu.pipeline_mode<synchronous>, transform_indices = @transform_1, window_bounds = array<i64: 32, 128>}, {pipeline_mode = #tpu.pipeline_mode<synchronous>, transform_indices = @transform_2, window_bounds = array<i64: 1, 128>}, {pipeline_mode = #tpu.pipeline_mode<synchronous>, transform_indices = @transform_3, window_bounds = array<i64: 128, 16>}, {pipeline_mode = #tpu.pipeline_mode<synchronous>, transform_indices = @transform_4, window_bounds = array<i64: 1, 16>}, {transform_indices = @transform_5, window_bounds = array<i64: 32, 16>}]} {
    %c0 = arith.constant 0 : index
    %c0_0 = arith.constant 0 : index
    %0 = vector.load %arg1[%c0, %c0_0] : memref<32x32xf32, #tpu.memory_space<vmem>>, vector<32x32xf32>
    %1 = arith.truncf %0 : vector<32x32xf32> to vector<32x32xbf16>
    %c0_1 = arith.constant 0 : index
    %c0_2 = arith.constant 0 : index
    %2 = vector.load %arg2[%c0_1, %c0_2] : memref<32x128xbf16, #tpu.memory_space<vmem>>, vector<32x128xbf16>
    %cst = arith.constant dense<0.000000e+00> : vector<32x128xf32>
    %3 = tpu.matmul %1, %2, %cst {dimension_numbers = #tpu.dot_dimension_numbers<[1], [0], [0], [1], [0, 0, 1, 1], [], []>} : vector<32x32xbf16>, vector<32x128xbf16>, vector<32x128xf32> -> vector<32x128xf32>
    %c0_3 = arith.constant 0 : index
    %c0_4 = arith.constant 0 : index
    %4 = vector.load %arg3[%c0_3, %c0_4] : memref<1x128xf32, #tpu.memory_space<vmem>>, vector<1x128xf32>
    %5 = vector.broadcast %4 : vector<1x128xf32> to vector<32x128xf32>
    %6 = arith.addf %3, %5 : vector<32x128xf32>
    %7 = math.tanh %6 : vector<32x128xf32>
    %8 = arith.truncf %7 : vector<32x128xf32> to vector<32x128xbf16>
    %c0_5 = arith.constant 0 : index
    %c0_6 = arith.constant 0 : index
    %9 = vector.load %arg4[%c0_5, %c0_6] : memref<128x16xbf16, #tpu.memory_space<vmem>>, vector<128x16xbf16>
    %cst_7 = arith.constant dense<0.000000e+00> : vector<32x16xf32>
    %10 = tpu.matmul %8, %9, %cst_7 {dimension_numbers = #tpu.dot_dimension_numbers<[1], [0], [0], [1], [0, 0, 1, 1], [], []>} : vector<32x128xbf16>, vector<128x16xbf16>, vector<32x16xf32> -> vector<32x16xf32>
    %c0_8 = arith.constant 0 : index
    %c0_9 = arith.constant 0 : index
    %11 = vector.load %arg5[%c0_8, %c0_9] : memref<1x16xf32, #tpu.memory_space<vmem>>, vector<1x16xf32>
    %12 = vector.broadcast %11 : vector<1x16xf32> to vector<32x16xf32>
    %13 = arith.addf %10, %12 : vector<32x16xf32>
    %c0_10 = arith.constant 0 : index
    %c0_11 = arith.constant 0 : index
    %14 = vector.load %arg6[%c0_10, %c0_11] : memref<32x16xf32, #tpu.memory_space<vmem>>, vector<32x16xf32>
    tpu.vector_store %arg6[%c0_10, %c0_11], %13 {strides = array<i32>} : memref<32x16xf32, #tpu.memory_space<vmem>>, vector<32x16xf32>,
    return
  }
  func.func @transform_0(%arg0: i32) -> (i32, i32) {
    %c0_i32 = arith.constant 0 : i32
    %c0_i32_0 = arith.constant 0 : i32
    return %arg0, %c0_i32 : i32, i32
  }
  func.func @transform_1(%arg0: i32) -> (i32, i32) {
    %c0_i32 = arith.constant 0 : i32
    %c0_i32_0 = arith.constant 0 : i32
    %c0_i32_1 = arith.constant 0 : i32
    return %c0_i32, %c0_i32_0 : i32, i32
  }
  func.func @transform_2(%arg0: i32) -> (i32, i32) {
    %c0_i32 = arith.constant 0 : i32
    %c0_i32_0 = arith.constant 0 : i32
    %c0_i32_1 = arith.constant 0 : i32
    return %c0_i32, %c0_i32_0 : i32, i32
  }
  func.func @transform_3(%arg0: i32) -> (i32, i32) {
    %c0_i32 = arith.constant 0 : i32
    %c0_i32_0 = arith.constant 0 : i32
    %c0_i32_1 = arith.constant 0 : i32
    return %c0_i32, %c0_i32_0 : i32, i32
  }
  func.func @transform_4(%arg0: i32) -> (i32, i32) {
    %c0_i32 = arith.constant 0 : i32
    %c0_i32_0 = arith.constant 0 : i32
    %c0_i32_1 = arith.constant 0 : i32
    return %c0_i32, %c0_i32_0 : i32, i32
  }
  func.func @transform_5(%arg0: i32) -> (i32, i32) {
    %c0_i32 = arith.constant 0 : i32
    %c0_i32_0 = arith.constant 0 : i32
    return %arg0, %c0_i32 : i32, i32
  }
}

</mosaic_0001>

<llo_original>
// kernel: tpu_custom_call.1
$region0: #{tpu_custom_call.1}
  #allocation0 [shape = 'u32[]', space=smem, size = 0x4, offset = 0x4, fixed_abs, tag = 'smem constant byte address 0x4 - core index']
  #allocation1 [shape = 'u32[144,128]{1,0:T(1,128)}', space=vmem, size = 0x12000, scoped, tag = 'internal scratch']
  %s0 = inlined_call_operand.vmem [shape: f32[64,8], index: 0, kind: input, shape index: {}]
  %s1 = inlined_call_operand.vmem [shape: bf16[8,128], index: 1, kind: input, shape index: {}]
  %s2 = inlined_call_operand.vmem [shape: f32[1,128], index: 2, kind: input, shape index: {}]
  %s3 = inlined_call_operand.vmem [shape: bf16[128,16], index: 3, kind: input, shape index: {}]
  %s4 = inlined_call_operand.vmem [shape: f32[1,16], index: 4, kind: input, shape index: {}]
  %s5 = inlined_call_operand.vmem [shape: f32[64,16], index: 5, kind: output, shape index: {}]
  %s6 = sld [smem:[#allocation0]]
  $region30: #{tpu_custom_call.1} parent=0
    _
  %s8 = ssub.s32 1, %s6
  %s9 = scalar_select 0, %s8, %s6
  // Predicated region
  $region2: #{tpu_custom_call.1} parent=0 // pred_check
    _
  $region3: #{tpu_custom_call.1} parent=0 // pred_check_branch
    %11 = sbr.rel (0) target = $region5
  $region4: #{tpu_custom_call.1} parent=0 // pred_region
    _
  $region5: #{tpu_custom_call.1} parent=0 // pred_fallthru
    _
  // Predicated region
  $region6: #{tpu_custom_call.1} parent=0 // pred_check
    _
  $region7: #{tpu_custom_call.1} parent=0 // pred_check_branch
    %13 = sbr.rel (0) target = $region9
  $region8: #{tpu_custom_call.1} parent=0 // pred_region
    _
  $region9: #{tpu_custom_call.1} parent=0 // pred_fallthru
    _
  // Predicated region
  $region10: #{tpu_custom_call.1} parent=0 // pred_check
    _
  $region11: #{tpu_custom_call.1} parent=0 // pred_check_branch
    %15 = sbr.rel (0) target = $region13
  $region12: #{tpu_custom_call.1} parent=0 // pred_region
    _
  $region13: #{tpu_custom_call.1} parent=0 // pred_fallthru
    _
  // Predicated region
  $region14: #{tpu_custom_call.1} parent=0 // pred_check
    _
  $region15: #{tpu_custom_call.1} parent=0 // pred_check_branch
    %17 = sbr.rel (0) target = $region17
  $region16: #{tpu_custom_call.1} parent=0 // pred_region
    _
  $region17: #{tpu_custom_call.1} parent=0 // pred_fallthru
    _
  // Predicated region
  $region18: #{tpu_custom_call.1} parent=0 // pred_check
    _
  $region19: #{tpu_custom_call.1} parent=0 // pred_check_branch
    %19 = sbr.rel (0) target = $region21
  $region20: #{tpu_custom_call.1} parent=0 // pred_region
    _
  $region21: #{tpu_custom_call.1} parent=0 // pred_fallthru
    _
  %v21 = vld [vmem:[%s0] sm:$0xff]
  %v22 = vld [vmem:[%s0 + $0x8] sm:$0xff]
  %v23 = vld [vmem:[%s0 + $0x10] sm:$0xff]
  %v24 = vld [vmem:[%s0 + $0x18] sm:$0xff]
  %v25 = vld [vmem:[%s0 + $0x20] sm:$0xff]
  %v26 = vld [vmem:[%s0 + $0x28] sm:$0xff]
  %v27 = vld [vmem:[%s0 + $0x30] sm:$0xff]
  %v28 = vld [vmem:[%s0 + $0x38] sm:$0xff]
  %v29 = vpack.c.bf16 %v22, %v21
  %v30 = vpack.c.bf16 %v24, %v23
  %v31 = vpack.c.bf16 %v26, %v25
  %v32 = vpack.c.bf16 %v28, %v27
  %v33 = vld [vmem:[%s1] sm:$0xf]
  %vm34 = vcmask 64512
  %v36 = vsel %vm34, %v29, 0
  %v39 = vsel %vm34, %v30, 0
  %v42 = vsel %vm34, %v31, 0
  %v45 = vsel %vm34, %v32, 0
  %vm47 = vcmask 1043456
  %v49 = vsel %vm47, %v33, 0
  %51 = vmatprep.subr.bf16.mxu0 0
  %52 = vmatpush1.bf16.msra.mxu0 0
  %53 = vmatprep.subr.bf16.mxu0 0
  %54 = vmatpush1.bf16.msra.mxu0 0
  %55 = vmatprep.subr.bf16.mxu0 0
  %56 = vmatpush1.bf16.msra.mxu0 0
  %57 = vmatprep.subr.bf16.mxu0 0
  %58 = vmatpush1.bf16.msra.mxu0 0
  %59 = vmatprep.subr.bf16.mxu0 0
  %60 = vmatpush1.bf16.msra.mxu0 0
  %61 = vmatprep.subr.bf16.mxu0 0
  %62 = vmatpush1.bf16.msra.mxu0 0
  %63 = vmatprep.subr.bf16.mxu0 0
  %64 = vmatpush1.bf16.msra.mxu0 0
  %65 = vmatprep.subr.bf16.mxu0 0
  %66 = vmatpush1.bf16.msra.mxu0 %v49
  %67 = vmatprep.subr.bf16.mxu0 0
  %68 = vmatpush2.bf16.msra.mxu0 0
  %69 = vmatprep.subr.bf16.mxu0 0
  %70 = vmatpush2.bf16.msra.mxu0 0
  %71 = vmatprep.subr.bf16.mxu0 0
  %72 = vmatpush2.bf16.msra.mxu0 0
  %73 = vmatprep.subr.bf16.mxu0 0
  %74 = vmatpush2.bf16.msra.mxu0 0
  %75 = vmatprep.subr.bf16.mxu0 0
  %76 = vmatpush2.bf16.msra.mxu0 0
  %77 = vmatprep.subr.bf16.mxu0 0
  %78 = vmatpush2.bf16.msra.mxu0 0
  %79 = vmatprep.subr.bf16.mxu0 0
  %80 = vmatpush2.bf16.msra.mxu0 0
  %81 = vmatprep.subr.bf16.mxu0 0
  %82 = vmatpush2.bf16.msra.mxu0 0
  %83 = vmatprep.mubr.bf16.mxu0 0
  %84 = vmatmul.mubr.bf16.gmra.mxu0 %v36
  %v85 = vpop.f32.mrf.mxu0
  %v86 = vadd.f32 0.0, %v85
  %v87 = vpop.f32.mrf.mxu0
  %v88 = vpop.f32.mrf.mxu0
  %v89 = vadd.f32 0.0, %v88
  %v90 = vpop.f32.mrf.mxu0
  %91 = vmatprep.mubr.bf16.mxu0 0
  %92 = vmatmul.mubr.bf16.gmra.mxu0 %v39
  %v93 = vpop.f32.mrf.mxu0
  %v94 = vadd.f32 0.0, %v93
  %v95 = vpop.f32.mrf.mxu0
  %v96 = vpop.f32.mrf.mxu0
  %v97 = vadd.f32 0.0, %v96
  %v98 = vpop.f32.mrf.mxu0
  %99 = vmatprep.mubr.bf16.mxu0 0
  %100 = vmatmul.mubr.bf16.gmra.mxu0 %v42
  %v101 = vpop.f32.mrf.mxu0
  %v102 = vadd.f32 0.0, %v101
  %v103 = vpop.f32.mrf.mxu0
  %v104 = vpop.f32.mrf.mxu0
  %v105 = vadd.f32 0.0, %v104
  %v106 = vpop.f32.mrf.mxu0
  %107 = vmatprep.mubr.bf16.mxu0 0
  %108 = vmatmul.mubr.bf16.gmra.mxu0 %v45
  %v109 = vpop.f32.mrf.mxu0
  %v110 = vadd.f32 0.0, %v109
  %v111 = vpop.f32.mrf.mxu0
  %v112 = vpop.f32.mrf.mxu0
  %v113 = vadd.f32 0.0, %v112
  %v114 = vpop.f32.mrf.mxu0
  %115 = vdwg.mxu0
  %v116 = vpack.c.bf16 %v89, %v86
  %v117 = vpack.c.bf16 %v97, %v94
  %v118 = vpack.c.bf16 %v105, %v102
  %v119 = vpack.c.bf16 %v113, %v110
  %v120 = vld [vmem:[%s2] sm:$0x1]
  %v121 = vpack.c.bf16 %v120, %v120
  %v123 = vpack.i.b16 %v121, %v121
  %v125 = vlaneseq
  %v126 = vshrl.u32 %v125, 7
  %v127 = vsub.s32 0, %v126
  %v128 = vrot.slane %v123, %v127
  %v129 = vadd.bf16 %v116, %v128
  %v130 = vadd.bf16 %v117, %v128
  %v131 = vadd.bf16 %v118, %v128
  %v132 = vadd.bf16 %v119, %v128
  %v133 = vtanh.bf16.pop %v129
  %v134 = vtanh.bf16.pop %v130
  %v135 = vtanh.bf16.pop %v131
  %v136 = vtanh.bf16.pop %v132
  %v137 = vld [vmem:[%s3] sm:$0xf]
  %v138 = vld [vmem:[%s3 + $0x4] sm:$0xf]
  %v139 = vld [vmem:[%s3 + $0x8] sm:$0xf]
  %v140 = vld [vmem:[%s3 + $0xc] sm:$0xf]
  %v141 = vld [vmem:[%s3 + $0x10] sm:$0xf]
  %v142 = vld [vmem:[%s3 + $0x14] sm:$0xf]
  %v143 = vld [vmem:[%s3 + $0x18] sm:$0xf]
  %v144 = vld [vmem:[%s3 + $0x1c] sm:$0xf]
  %v145 = vld [vmem:[%s3 + $0x20] sm:$0xf]
  %v146 = vld [vmem:[%s3 + $0x24] sm:$0xf]
  %v147 = vld [vmem:[%s3 + $0x28] sm:$0xf]
  %v148 = vld [vmem:[%s3 + $0x2c] sm:$0xf]
  %v149 = vld [vmem:[%s3 + $0x30] sm:$0xf]
  %v150 = vld [vmem:[%s3 + $0x34] sm:$0xf]
  %v151 = vld [vmem:[%s3 + $0x38] sm:$0xf]
  %v152 = vld [vmem:[%s3 + $0x3c] sm:$0xf]
  %v153 = vld [vmem:[%s4] sm:$0x1]
  %v155 = vlaneseq
  %v156 = vshrl.u32 %v155, 7
  %v157 = vsub.s32 0, %v156
  %v158 = vrot.slane %v153, %v157
  %v176 = vunpack.c.l.b16 %v137
  %v177 = vunpack.c.l.b16 %v138
  %v178 = vunpack.c.l.b16 %v139
  %v179 = vunpack.c.l.b16 %v140
  %v180 = vunpack.c.l.b16 %v141
  %v181 = vunpack.c.l.b16 %v142
  %v182 = vunpack.c.l.b16 %v143
  %v183 = vunpack.c.l.b16 %v144
  %v184 = vunpack.c.l.b16 %v145
  %v185 = vunpack.c.l.b16 %v146
  %v186 = vunpack.c.l.b16 %v147
  %v187 = vunpack.c.l.b16 %v148
  %v188 = vunpack.c.l.b16 %v149
  %v189 = vunpack.c.l.b16 %v150
  %v190 = vunpack.c.l.b16 %v151
  %v191 = vunpack.c.l.b16 %v152
  %v192 = vpack.c.b16 %v177, %v176
  %v193 = vpack.c.b16 %v179, %v178
  %v194 = vpack.c.b16 %v181, %v180
  %v195 = vpack.c.b16 %v183, %v182
  %v196 = vpack.c.b16 %v185, %v184
  %v197 = vpack.c.b16 %v187, %v186
  %v198 = vpack.c.b16 %v189, %v188
  %v199 = vpack.c.b16 %v191, %v190
  %208 = vmatprep.subr.bf16.mxu0 0
  %209 = vmatpush1.bf16.msra.mxu0 %v199
  %210 = vmatprep.subr.bf16.mxu0 0
  %211 = vmatpush1.bf16.msra.mxu0 %v198
  %212 = vmatprep.subr.bf16.mxu0 0
  %213 = vmatpush1.bf16.msra.mxu0 %v197
  %214 = vmatprep.subr.bf16.mxu0 0
  %215 = vmatpush1.bf16.msra.mxu0 %v196
  %216 = vmatprep.subr.bf16.mxu0 0
  %217 = vmatpush1.bf16.msra.mxu0 %v195
  %218 = vmatprep.subr.bf16.mxu0 0
  %219 = vmatpush1.bf16.msra.mxu0 %v194
  %220 = vmatprep.subr.bf16.mxu0 0
  %221 = vmatpush1.bf16.msra.mxu0 %v193
  %222 = vmatprep.subr.bf16.mxu0 0
  %223 = vmatpush1.bf16.msra.mxu0 %v192
  %224 = vmatprep.subr.bf16.mxu0 0
  %225 = vmatpush2.bf16.msra.mxu0 0
  %226 = vmatprep.subr.bf16.mxu0 0
  %227 = vmatpush2.bf16.msra.mxu0 0
  %228 = vmatprep.subr.bf16.mxu0 0
  %229 = vmatpush2.bf16.msra.mxu0 0
  %230 = vmatprep.subr.bf16.mxu0 0
  %231 = vmatpush2.bf16.msra.mxu0 0
  %232 = vmatprep.subr.bf16.mxu0 0
  %233 = vmatpush2.bf16.msra.mxu0 0
  %234 = vmatprep.subr.bf16.mxu0 0
  %235 = vmatpush2.bf16.msra.mxu0 0
  %236 = vmatprep.subr.bf16.mxu0 0
  %237 = vmatpush2.bf16.msra.mxu0 0
  %238 = vmatprep.subr.bf16.mxu0 0
  %239 = vmatpush2.bf16.msra.mxu0 0
  %240 = vmatprep.mubr.bf16.mxu0 0
  %241 = vmatmul.mubr.bf16.gmra.mxu0 %v133
  %v242 = vpop.f32.mrf.mxu0
  %v243 = vadd.f32 %v158, %v242
  %v244 = vpop.f32.mrf.mxu0
  %v245 = vpop.f32.mrf.mxu0
  %v246 = vadd.f32 %v158, %v245
  %v247 = vpop.f32.mrf.mxu0
  %248 = vmatprep.mubr.bf16.mxu0 0
  %249 = vmatmul.mubr.bf16.gmra.mxu0 %v134
  %v250 = vpop.f32.mrf.mxu0
  %v251 = vadd.f32 %v158, %v250
  %v252 = vpop.f32.mrf.mxu0
  %v253 = vpop.f32.mrf.mxu0
  %v254 = vadd.f32 %v158, %v253
  %v255 = vpop.f32.mrf.mxu0
  %256 = vmatprep.mubr.bf16.mxu0 0
  %257 = vmatmul.mubr.bf16.gmra.mxu0 %v135
  %v258 = vpop.f32.mrf.mxu0
  %v259 = vadd.f32 %v158, %v258
  %v260 = vpop.f32.mrf.mxu0
  %v261 = vpop.f32.mrf.mxu0
  %v262 = vadd.f32 %v158, %v261
  %v263 = vpop.f32.mrf.mxu0
  %264 = vmatprep.mubr.bf16.mxu0 0
  %265 = vmatmul.mubr.bf16.gmra.mxu0 %v136
  %v266 = vpop.f32.mrf.mxu0
  %v267 = vadd.f32 %v158, %v266
  %v268 = vpop.f32.mrf.mxu0
  %v269 = vpop.f32.mrf.mxu0
  %v270 = vadd.f32 %v158, %v269
  %v271 = vpop.f32.mrf.mxu0
  %272 = vdwg.mxu0
  %vm273 = vcmask 130048
  %274 = vst.msk [vmem:[%s5] sm:$0xff] %vm273, %v243
  %275 = vst.msk [vmem:[%s5 + $0x8] sm:$0xff] %vm273, %v246
  %276 = vst.msk [vmem:[%s5 + $0x10] sm:$0xff] %vm273, %v251
  %277 = vst.msk [vmem:[%s5 + $0x18] sm:$0xff] %vm273, %v254
  %278 = vst.msk [vmem:[%s5 + $0x20] sm:$0xff] %vm273, %v259
  %279 = vst.msk [vmem:[%s5 + $0x28] sm:$0xff] %vm273, %v262
  %280 = vst.msk [vmem:[%s5 + $0x30] sm:$0xff] %vm273, %v267
  %281 = vst.msk [vmem:[%s5 + $0x38] sm:$0xff] %vm273, %v270
  // Predicated region
  $region22: #{tpu_custom_call.1} parent=0 // pred_check
    _
  $region23: #{tpu_custom_call.1} parent=0 // pred_check_branch
    %283 = sbr.rel (0) target = $region25
  $region24: #{tpu_custom_call.1} parent=0 // pred_region
    _
  $region25: #{tpu_custom_call.1} parent=0 // pred_fallthru
    _
  // Predicated region
  $region26: #{tpu_custom_call.1} parent=0 // pred_check
    _
  $region27: #{tpu_custom_call.1} parent=0 // pred_check_branch
    %285 = sbr.rel (0) target = $region29
  $region28: #{tpu_custom_call.1} parent=0 // pred_region
    _
  $region29: #{tpu_custom_call.1} parent=0 // pred_fallthru
    _

// kernel: tpu_custom_call.1
$region0: #{tpu_custom_call.1}
  #allocation0 [shape = 'u32[]', space=smem, size = 0x4, offset = 0x4, fixed_abs, tag = 'smem constant byte address 0x4 - core index']
  #allocation1 [shape = 'u32[144,128]{1,0:T(1,128)}', space=vmem, size = 0x12000, scoped, tag = 'internal scratch']
  %s0 = inlined_call_operand.vmem [shape: f32[64,8], index: 0, kind: input, shape index: {}]
  %s1 = inlined_call_operand.vmem [shape: bf16[8,128], index: 1, kind: input, shape index: {}]
  %s2 = inlined_call_operand.vmem [shape: f32[1,128], index: 2, kind: input, shape index: {}]
  %s3 = inlined_call_operand.vmem [shape: bf16[128,16], index: 3, kind: input, shape index: {}]
  %s4 = inlined_call_operand.vmem [shape: f32[1,16], index: 4, kind: input, shape index: {}]
  %s5 = inlined_call_operand.vmem [shape: f32[64,16], index: 5, kind: output, shape index: {}]
  %s6 = sld [smem:[#allocation0]]
  $region30: #{tpu_custom_call.1} parent=0
    _
  %s8 = ssub.s32 1, %s6
  %s9 = scalar_select 0, %s8, %s6
  // Predicated region
  $region2: #{tpu_custom_call.1} parent=0 // pred_check
    _
  $region3: #{tpu_custom_call.1} parent=0 // pred_check_branch
    %11 = sbr.rel (0) target = $region5
  $region4: #{tpu_custom_call.1} parent=0 // pred_region
    _
  $region5: #{tpu_custom_call.1} parent=0 // pred_fallthru
    _
  // Predicated region
  $region6: #{tpu_custom_call.1} parent=0 // pred_check
    _
  $region7: #{tpu_custom_call.1} parent=0 // pred_check_branch
    %13 = sbr.rel (0) target = $region9
  $region8: #{tpu_custom_call.1} parent=0 // pred_region
    _
  $region9: #{tpu_custom_call.1} parent=0 // pred_fallthru
    _
  // Predicated region
  $region10: #{tpu_custom_call.1} parent=0 // pred_check
    _
  $region11: #{tpu_custom_call.1} parent=0 // pred_check_branch
    %15 = sbr.rel (0) target = $region13
  $region12: #{tpu_custom_call.1} parent=0 // pred_region
    _
  $region13: #{tpu_custom_call.1} parent=0 // pred_fallthru
    _
  // Predicated region
  $region14: #{tpu_custom_call.1} parent=0 // pred_check
    _
  $region15: #{tpu_custom_call.1} parent=0 // pred_check_branch
    %17 = sbr.rel (0) target = $region17
  $region16: #{tpu_custom_call.1} parent=0 // pred_region
    _
  $region17: #{tpu_custom_call.1} parent=0 // pred_fallthru
    _
  // Predicated region
  $region18: #{tpu_custom_call.1} parent=0 // pred_check
    _
  $region19: #{tpu_custom_call.1} parent=0 // pred_check_branch
    %19 = sbr.rel (0) target = $region21
  $region20: #{tpu_custom_call.1} parent=0 // pred_region
    _
  $region21: #{tpu_custom_call.1} parent=0 // pred_fallthru
    _
  %v21 = vld [vmem:[%s0] sm:$0xff]
  %v22 = vld [vmem:[%s0 + $0x8] sm:$0xff]
  %v23 = vld [vmem:[%s0 + $0x10] sm:$0xff]
  %v24 = vld [vmem:[%s0 + $0x18] sm:$0xff]
  %v25 = vld [vmem:[%s0 + $0x20] sm:$0xff]
  %v26 = vld [vmem:[%s0 + $0x28] sm:$0xff]
  %v27 = vld [vmem:[%s0 + $0x30] sm:$0xff]
  %v28 = vld [vmem:[%s0 + $0x38] sm:$0xff]
  %v29 = vpack.c.bf16 %v22, %v21
  %v30 = vpack.c.bf16 %v24, %v23
  %v31 = vpack.c.bf16 %v26, %v25
  %v32 = vpack.c.bf16 %v28, %v27
  %v33 = vld [vmem:[%s1] sm:$0xf]
  %v34 = vld [vmem:[%s2] sm:$0x1]
  %v36 = vlaneseq
  %v37 = vshrl.u32 %v36, 7
  %v38 = vsub.s32 0, %v37
  %v39 = vrot.slane %v34, %v38
  %vm41 = vcmask 64512
  %v43 = vsel %vm41, %v29, 0
  %v46 = vsel %vm41, %v30, 0
  %v49 = vsel %vm41, %v31, 0
  %v52 = vsel %vm41, %v32, 0
  %vm54 = vcmask 1043456
  %v56 = vsel %vm54, %v33, 0
  %58 = vmatprep.subr.bf16.mxu0 0
  %59 = vmatpush1.bf16.msra.mxu0 0
  %60 = vmatprep.subr.bf16.mxu0 0
  %61 = vmatpush1.bf16.msra.mxu0 0
  %62 = vmatprep.subr.bf16.mxu0 0
  %63 = vmatpush1.bf16.msra.mxu0 0
  %64 = vmatprep.subr.bf16.mxu0 0
  %65 = vmatpush1.bf16.msra.mxu0 0
  %66 = vmatprep.subr.bf16.mxu0 0
  %67 = vmatpush1.bf16.msra.mxu0 0
  %68 = vmatprep.subr.bf16.mxu0 0
  %69 = vmatpush1.bf16.msra.mxu0 0
  %70 = vmatprep.subr.bf16.mxu0 0
  %71 = vmatpush1.bf16.msra.mxu0 0
  %72 = vmatprep.subr.bf16.mxu0 0
  %73 = vmatpush1.bf16.msra.mxu0 %v56
  %74 = vmatprep.subr.bf16.mxu0 0
  %75 = vmatpush2.bf16.msra.mxu0 0
  %76 = vmatprep.subr.bf16.mxu0 0
  %77 = vmatpush2.bf16.msra.mxu0 0
  %78 = vmatprep.subr.bf16.mxu0 0
  %79 = vmatpush2.bf16.msra.mxu0 0
  %80 = vmatprep.subr.bf16.mxu0 0
  %81 = vmatpush2.bf16.msra.mxu0 0
  %82 = vmatprep.subr.bf16.mxu0 0
  %83 = vmatpush2.bf16.msra.mxu0 0
  %84 = vmatprep.subr.bf16.mxu0 0
  %85 = vmatpush2.bf16.msra.mxu0 0
  %86 = vmatprep.subr.bf16.mxu0 0
  %87 = vmatpush2.bf16.msra.mxu0 0
  %88 = vmatprep.subr.bf16.mxu0 0
  %89 = vmatpush2.bf16.msra.mxu0 0
  %90 = vmatprep.mubr.bf16.mxu0 0
  %91 = vmatmul.mubr.bf16.gmra.mxu0 %v43
  %v92 = vpop.f32.mrf.mxu0
  %v93 = vadd.f32 %v39, %v92
  %v94 = vpop.f32.mrf.mxu0
  %v95 = vpop.f32.mrf.mxu0
  %v96 = vadd.f32 %v39, %v95
  %v97 = vpop.f32.mrf.mxu0
  %98 = vmatprep.mubr.bf16.mxu0 0
  %99 = vmatmul.mubr.bf16.gmra.mxu0 %v46
  %v100 = vpop.f32.mrf.mxu0
  %v101 = vadd.f32 %v39, %v100
  %v102 = vpop.f32.mrf.mxu0
  %v103 = vpop.f32.mrf.mxu0
  %v104 = vadd.f32 %v39, %v103
  %v105 = vpop.f32.mrf.mxu0
  %106 = vmatprep.mubr.bf16.mxu0 0
  %107 = vmatmul.mubr.bf16.gmra.mxu0 %v49
  %v108 = vpop.f32.mrf.mxu0
  %v109 = vadd.f32 %v39, %v108
  %v110 = vpop.f32.mrf.mxu0
  %v111 = vpop.f32.mrf.mxu0
  %v112 = vadd.f32 %v39, %v111
  %v113 = vpop.f32.mrf.mxu0
  %114 = vmatprep.mubr.bf16.mxu0 0
  %115 = vmatmul.mubr.bf16.gmra.mxu0 %v52
  %v116 = vpop.f32.mrf.mxu0
  %v117 = vadd.f32 %v39, %v116
  %v118 = vpop.f32.mrf.mxu0
  %v119 = vpop.f32.mrf.mxu0
  %v120 = vadd.f32 %v39, %v119
  %v121 = vpop.f32.mrf.mxu0
  %122 = vdwg.mxu0
  %v123 = vtanh.pop %v93
  %v124 = vtanh.pop %v96
  %v125 = vtanh.pop %v101
  %v126 = vtanh.pop %v104
  %v127 = vtanh.pop %v109
  %v128 = vtanh.pop %v112
  %v129 = vtanh.pop %v117
  %v130 = vtanh.pop %v120
  %v131 = vpack.c.bf16 %v124, %v123
  %v132 = vpack.c.bf16 %v126, %v125
  %v133 = vpack.c.bf16 %v128, %v127
  %v134 = vpack.c.bf16 %v130, %v129
  %v135 = vld [vmem:[%s3] sm:$0xf]
  %v136 = vld [vmem:[%s3 + $0x4] sm:$0xf]
  %v137 = vld [vmem:[%s3 + $0x8] sm:$0xf]
  %v138 = vld [vmem:[%s3 + $0xc] sm:$0xf]
  %v139 = vld [vmem:[%s3 + $0x10] sm:$0xf]
  %v140 = vld [vmem:[%s3 + $0x14] sm:$0xf]
  %v141 = vld [vmem:[%s3 + $0x18] sm:$0xf]
  %v142 = vld [vmem:[%s3 + $0x1c] sm:$0xf]
  %v143 = vld [vmem:[%s3 + $0x20] sm:$0xf]
  %v144 = vld [vmem:[%s3 + $0x24] sm:$0xf]
  %v145 = vld [vmem:[%s3 + $0x28] sm:$0xf]
  %v146 = vld [vmem:[%s3 + $0x2c] sm:$0xf]
  %v147 = vld [vmem:[%s3 + $0x30] sm:$0xf]
  %v148 = vld [vmem:[%s3 + $0x34] sm:$0xf]
  %v149 = vld [vmem:[%s3 + $0x38] sm:$0xf]
  %v150 = vld [vmem:[%s3 + $0x3c] sm:$0xf]
  %v151 = vld [vmem:[%s4] sm:$0x1]
  %v153 = vlaneseq
  %v154 = vshrl.u32 %v153, 7
  %v155 = vsub.s32 0, %v154
  %v156 = vrot.slane %v151, %v155
  %v174 = vunpack.c.l.b16 %v135
  %v175 = vunpack.c.l.b16 %v136
  %v176 = vunpack.c.l.b16 %v137
  %v177 = vunpack.c.l.b16 %v138
  %v178 = vunpack.c.l.b16 %v139
  %v179 = vunpack.c.l.b16 %v140
  %v180 = vunpack.c.l.b16 %v141
  %v181 = vunpack.c.l.b16 %v142
  %v182 = vunpack.c.l.b16 %v143
  %v183 = vunpack.c.l.b16 %v144
  %v184 = vunpack.c.l.b16 %v145
  %v185 = vunpack.c.l.b16 %v146
  %v186 = vunpack.c.l.b16 %v147
  %v187 = vunpack.c.l.b16 %v148
  %v188 = vunpack.c.l.b16 %v149
  %v189 = vunpack.c.l.b16 %v150
  %v190 = vpack.c.b16 %v175, %v174
  %v191 = vpack.c.b16 %v177, %v176
  %v192 = vpack.c.b16 %v179, %v178
  %v193 = vpack.c.b16 %v181, %v180
  %v194 = vpack.c.b16 %v183, %v182
  %v195 = vpack.c.b16 %v185, %v184
  %v196 = vpack.c.b16 %v187, %v186
  %v197 = vpack.c.b16 %v189, %v188
  %206 = vmatprep.subr.bf16.mxu0 0
  %207 = vmatpush1.bf16.msra.mxu0 %v197
  %208 = vmatprep.subr.bf16.mxu0 0
  %209 = vmatpush1.bf16.msra.mxu0 %v196
  %210 = vmatprep.subr.bf16.mxu0 0
  %211 = vmatpush1.bf16.msra.mxu0 %v195
  %212 = vmatprep.subr.bf16.mxu0 0
  %213 = vmatpush1.bf16.msra.mxu0 %v194
  %214 = vmatprep.subr.bf16.mxu0 0
  %215 = vmatpush1.bf16.msra.mxu0 %v193
  %216 = vmatprep.subr.bf16.mxu0 0
  %217 = vmatpush1.bf16.msra.mxu0 %v192
  %218 = vmatprep.subr.bf16.mxu0 0
  %219 = vmatpush1.bf16.msra.mxu0 %v191
  %220 = vmatprep.subr.bf16.mxu0 0
  %221 = vmatpush1.bf16.msra.mxu0 %v190
  %222 = vmatprep.subr.bf16.mxu0 0
  %223 = vmatpush2.bf16.msra.mxu0 0
  %224 = vmatprep.subr.bf16.mxu0 0
  %225 = vmatpush2.bf16.msra.mxu0 0
  %226 = vmatprep.subr.bf16.mxu0 0
  %227 = vmatpush2.bf16.msra.mxu0 0
  %228 = vmatprep.subr.bf16.mxu0 0
  %229 = vmatpush2.bf16.msra.mxu0 0
  %230 = vmatprep.subr.bf16.mxu0 0
  %231 = vmatpush2.bf16.msra.mxu0 0
  %232 = vmatprep.subr.bf16.mxu0 0
  %233 = vmatpush2.bf16.msra.mxu0 0
  %234 = vmatprep.subr.bf16.mxu0 0
  %235 = vmatpush2.bf16.msra.mxu0 0
  %236 = vmatprep.subr.bf16.mxu0 0
  %237 = vmatpush2.bf16.msra.mxu0 0
  %238 = vmatprep.mubr.bf16.mxu0 0
  %239 = vmatmul.mubr.bf16.gmra.mxu0 %v131
  %v240 = vpop.f32.mrf.mxu0
  %v241 = vadd.f32 %v156, %v240
  %v242 = vpop.f32.mrf.mxu0
  %v243 = vpop.f32.mrf.mxu0
  %v244 = vadd.f32 %v156, %v243
  %v245 = vpop.f32.mrf.mxu0
  %246 = vmatprep.mubr.bf16.mxu0 0
  %247 = vmatmul.mubr.bf16.gmra.mxu0 %v132
  %v248 = vpop.f32.mrf.mxu0
  %v249 = vadd.f32 %v156, %v248
  %v250 = vpop.f32.mrf.mxu0
  %v251 = vpop.f32.mrf.mxu0
  %v252 = vadd.f32 %v156, %v251
  %v253 = vpop.f32.mrf.mxu0
  %254 = vmatprep.mubr.bf16.mxu0 0
  %255 = vmatmul.mubr.bf16.gmra.mxu0 %v133
  %v256 = vpop.f32.mrf.mxu0
  %v257 = vadd.f32 %v156, %v256
  %v258 = vpop.f32.mrf.mxu0
  %v259 = vpop.f32.mrf.mxu0
  %v260 = vadd.f32 %v156, %v259
  %v261 = vpop.f32.mrf.mxu0
  %262 = vmatprep.mubr.bf16.mxu0 0
  %263 = vmatmul.mubr.bf16.gmra.mxu0 %v134
  %v264 = vpop.f32.mrf.mxu0
  %v265 = vadd.f32 %v156, %v264
  %v266 = vpop.f32.mrf.mxu0
  %v267 = vpop.f32.mrf.mxu0
  %v268 = vadd.f32 %v156, %v267
  %v269 = vpop.f32.mrf.mxu0
  %270 = vdwg.mxu0
  %vm271 = vcmask 130048
  %272 = vst.msk [vmem:[%s5] sm:$0xff] %vm271, %v241
  %273 = vst.msk [vmem:[%s5 + $0x8] sm:$0xff] %vm271, %v244
  %274 = vst.msk [vmem:[%s5 + $0x10] sm:$0xff] %vm271, %v249
  %275 = vst.msk [vmem:[%s5 + $0x18] sm:$0xff] %vm271, %v252
  %276 = vst.msk [vmem:[%s5 + $0x20] sm:$0xff] %vm271, %v257
  %277 = vst.msk [vmem:[%s5 + $0x28] sm:$0xff] %vm271, %v260
  %278 = vst.msk [vmem:[%s5 + $0x30] sm:$0xff] %vm271, %v265
  %279 = vst.msk [vmem:[%s5 + $0x38] sm:$0xff] %vm271, %v268
  // Predicated region
  $region22: #{tpu_custom_call.1} parent=0 // pred_check
    _
  $region23: #{tpu_custom_call.1} parent=0 // pred_check_branch
    %281 = sbr.rel (0) target = $region25
  $region24: #{tpu_custom_call.1} parent=0 // pred_region
    _
  $region25: #{tpu_custom_call.1} parent=0 // pred_fallthru
    _
  // Predicated region
  $region26: #{tpu_custom_call.1} parent=0 // pred_check
    _
  $region27: #{tpu_custom_call.1} parent=0 // pred_check_branch
    %283 = sbr.rel (0) target = $region29
  $region28: #{tpu_custom_call.1} parent=0 // pred_region
    _
  $region29: #{tpu_custom_call.1} parent=0 // pred_fallthru
    _

// kernel: tpu_custom_call.1
$region0: #{tpu_custom_call.1}
  #allocation0 [shape = 'u32[]', space=smem, size = 0x4, offset = 0x4, fixed_abs, tag = 'smem constant byte address 0x4 - core index']
  #allocation1 [shape = 'u32[144,128]{1,0:T(1,128)}', space=vmem, size = 0x12000, scoped, tag = 'internal scratch']
  %s0 = inlined_call_operand.vmem [shape: f32[32,32], index: 0, kind: input, shape index: {}]
  %s1 = inlined_call_operand.vmem [shape: bf16[32,128], index: 1, kind: input, shape index: {}]
  %s2 = inlined_call_operand.vmem [shape: f32[1,128], index: 2, kind: input, shape index: {}]
  %s3 = inlined_call_operand.vmem [shape: bf16[128,16], index: 3, kind: input, shape index: {}]
  %s4 = inlined_call_operand.vmem [shape: f32[1,16], index: 4, kind: input, shape index: {}]
  %s5 = inlined_call_operand.vmem [shape: f32[32,16], index: 5, kind: output, shape index: {}]
  %s6 = sld [smem:[#allocation0]]
  $region30: #{tpu_custom_call.1} parent=0
    _
  %s8 = ssub.s32 1, %s6
  %s9 = scalar_select 0, %s8, %s6
  // Predicated region
  $region2: #{tpu_custom_call.1} parent=0 // pred_check
    _
  $region3: #{tpu_custom_call.1} parent=0 // pred_check_branch
    %11 = sbr.rel (0) target = $region5
  $region4: #{tpu_custom_call.1} parent=0 // pred_region
    _
  $region5: #{tpu_custom_call.1} parent=0 // pred_fallthru
    _
  // Predicated region
  $region6: #{tpu_custom_call.1} parent=0 // pred_check
    _
  $region7: #{tpu_custom_call.1} parent=0 // pred_check_branch
    %13 = sbr.rel (0) target = $region9
  $region8: #{tpu_custom_call.1} parent=0 // pred_region
    _
  $region9: #{tpu_custom_call.1} parent=0 // pred_fallthru
    _
  // Predicated region
  $region10: #{tpu_custom_call.1} parent=0 // pred_check
    _
  $region11: #{tpu_custom_call.1} parent=0 // pred_check_branch
    %15 = sbr.rel (0) target = $region13
  $region12: #{tpu_custom_call.1} parent=0 // pred_region
    _
  $region13: #{tpu_custom_call.1} parent=0 // pred_fallthru
    _
  // Predicated region
  $region14: #{tpu_custom_call.1} parent=0 // pred_check
    _
  $region15: #{tpu_custom_call.1} parent=0 // pred_check_branch
    %17 = sbr.rel (0) target = $region17
  $region16: #{tpu_custom_call.1} parent=0 // pred_region
    _
  $region17: #{tpu_custom_call.1} parent=0 // pred_fallthru
    _
  // Predicated region
  $region18: #{tpu_custom_call.1} parent=0 // pred_check
    _
  $region19: #{tpu_custom_call.1} parent=0 // pred_check_branch
    %19 = sbr.rel (0) target = $region21
  $region20: #{tpu_custom_call.1} parent=0 // pred_region
    _
  $region21: #{tpu_custom_call.1} parent=0 // pred_fallthru
    _
  %v21 = vld [vmem:[%s0] sm:$0xff]
  %v22 = vld [vmem:[%s0 + $0x8] sm:$0xff]
  %v23 = vld [vmem:[%s0 + $0x10] sm:$0xff]
  %v24 = vld [vmem:[%s0 + $0x18] sm:$0xff]
  %v25 = vpack.c.bf16 %v22, %v21
  %v26 = vpack.c.bf16 %v24, %v23
  %v27 = vld [vmem:[%s1] sm:$0xf]
  %v28 = vld [vmem:[%s1 + $0x4] sm:$0xf]
  %v29 = vld [vmem:[%s1 + $0x8] sm:$0xf]
  %v30 = vld [vmem:[%s1 + $0xc] sm:$0xf]
  %v31 = vld [vmem:[%s2] sm:$0x1]
  %v33 = vlaneseq
  %v34 = vshrl.u32 %v33, 7
  %v35 = vsub.s32 0, %v34
  %v36 = vrot.slane %v31, %v35
  %v42 = vunpack.c.l.b16 %v27
  %v43 = vunpack.c.l.b16 %v28
  %v44 = vunpack.c.l.b16 %v29
  %v45 = vunpack.c.l.b16 %v30
  %v46 = vpack.c.b16 %v43, %v42
  %v47 = vpack.c.b16 %v45, %v44
  %vm50 = vcmask 261120
  %v52 = vsel %vm50, %v25, 0
  %v55 = vsel %vm50, %v26, 0
  %57 = vmatprep.subr.bf16.mxu0 0
  %58 = vmatpush1.bf16.msra.mxu0 0
  %59 = vmatprep.subr.bf16.mxu0 0
  %60 = vmatpush1.bf16.msra.mxu0 0
  %61 = vmatprep.subr.bf16.mxu0 0
  %62 = vmatpush1.bf16.msra.mxu0 0
  %63 = vmatprep.subr.bf16.mxu0 0
  %64 = vmatpush1.bf16.msra.mxu0 0
  %65 = vmatprep.subr.bf16.mxu0 0
  %66 = vmatpush1.bf16.msra.mxu0 0
  %67 = vmatprep.subr.bf16.mxu0 0
  %68 = vmatpush1.bf16.msra.mxu0 0
  %69 = vmatprep.subr.bf16.mxu0 0
  %70 = vmatpush1.bf16.msra.mxu0 %v47
  %71 = vmatprep.subr.bf16.mxu0 0
  %72 = vmatpush1.bf16.msra.mxu0 %v46
  %73 = vmatprep.subr.bf16.mxu0 0
  %74 = vmatpush2.bf16.msra.mxu0 0
  %75 = vmatprep.subr.bf16.mxu0 0
  %76 = vmatpush2.bf16.msra.mxu0 0
  %77 = vmatprep.subr.bf16.mxu0 0
  %78 = vmatpush2.bf16.msra.mxu0 0
  %79 = vmatprep.subr.bf16.mxu0 0
  %80 = vmatpush2.bf16.msra.mxu0 0
  %81 = vmatprep.subr.bf16.mxu0 0
  %82 = vmatpush2.bf16.msra.mxu0 0
  %83 = vmatprep.subr.bf16.mxu0 0
  %84 = vmatpush2.bf16.msra.mxu0 0
  %85 = vmatprep.subr.bf16.mxu0 0
  %86 = vmatpush2.bf16.msra.mxu0 0
  %87 = vmatprep.subr.bf16.mxu0 0
  %88 = vmatpush2.bf16.msra.mxu0 0
  %89 = vmatprep.mubr.bf16.mxu0 0
  %90 = vmatmul.mubr.bf16.gmra.mxu0 %v52
  %v91 = vpop.f32.mrf.mxu0
  %v92 = vadd.f32 %v36, %v91
  %v93 = vpop.f32.mrf.mxu0
  %v94 = vpop.f32.mrf.mxu0
  %v95 = vadd.f32 %v36, %v94
  %v96 = vpop.f32.mrf.mxu0
  %97 = vmatprep.mubr.bf16.mxu0 0
  %98 = vmatmul.mubr.bf16.gmra.mxu0 %v55
  %v99 = vpop.f32.mrf.mxu0
  %v100 = vadd.f32 %v36, %v99
  %v101 = vpop.f32.mrf.mxu0
  %v102 = vpop.f32.mrf.mxu0
  %v103 = vadd.f32 %v36, %v102
  %v104 = vpop.f32.mrf.mxu0
  %105 = vdwg.mxu0
  %v106 = vtanh.pop %v92
  %v107 = vtanh.pop %v95
  %v108 = vtanh.pop %v100
  %v109 = vtanh.pop %v103
  %v110 = vpack.c.bf16 %v107, %v106
  %v111 = vpack.c.bf16 %v109, %v108
  %v112 = vld [vmem:[%s3] sm:$0xf]
  %v113 = vld [vmem:[%s3 + $0x4] sm:$0xf]
  %v114 = vld [vmem:[%s3 + $0x8] sm:$0xf]
  %v115 = vld [vmem:[%s3 + $0xc] sm:$0xf]
  %v116 = vld [vmem:[%s3 + $0x10] sm:$0xf]
  %v117 = vld [vmem:[%s3 + $0x14] sm:$0xf]
  %v118 = vld [vmem:[%s3 + $0x18] sm:$0xf]
  %v119 = vld [vmem:[%s3 + $0x1c] sm:$0xf]
  %v120 = vld [vmem:[%s3 + $0x20] sm:$0xf]
  %v121 = vld [vmem:[%s3 + $0x24] sm:$0xf]
  %v122 = vld [vmem:[%s3 + $0x28] sm:$0xf]
  %v123 = vld [vmem:[%s3 + $0x2c] sm:$0xf]
  %v124 = vld [vmem:[%s3 + $0x30] sm:$0xf]
  %v125 = vld [vmem:[%s3 + $0x34] sm:$0xf]
  %v126 = vld [vmem:[%s3 + $0x38] sm:$0xf]
  %v127 = vld [vmem:[%s3 + $0x3c] sm:$0xf]
  %v128 = vld [vmem:[%s4] sm:$0x1]
  %v130 = vlaneseq
  %v131 = vshrl.u32 %v130, 7
  %v132 = vsub.s32 0, %v131
  %v133 = vrot.slane %v128, %v132
  %v151 = vunpack.c.l.b16 %v112
  %v152 = vunpack.c.l.b16 %v113
  %v153 = vunpack.c.l.b16 %v114
  %v154 = vunpack.c.l.b16 %v115
  %v155 = vunpack.c.l.b16 %v116
  %v156 = vunpack.c.l.b16 %v117
  %v157 = vunpack.c.l.b16 %v118
  %v158 = vunpack.c.l.b16 %v119
  %v159 = vunpack.c.l.b16 %v120
  %v160 = vunpack.c.l.b16 %v121
  %v161 = vunpack.c.l.b16 %v122
  %v162 = vunpack.c.l.b16 %v123
  %v163 = vunpack.c.l.b16 %v124
  %v164 = vunpack.c.l.b16 %v125
  %v165 = vunpack.c.l.b16 %v126
  %v166 = vunpack.c.l.b16 %v127
  %v167 = vpack.c.b16 %v152, %v151
  %v168 = vpack.c.b16 %v154, %v153
  %v169 = vpack.c.b16 %v156, %v155
  %v170 = vpack.c.b16 %v158, %v157
  %v171 = vpack.c.b16 %v160, %v159
  %v172 = vpack.c.b16 %v162, %v161
  %v173 = vpack.c.b16 %v164, %v163
  %v174 = vpack.c.b16 %v166, %v165
  %183 = vmatprep.subr.bf16.mxu0 0
  %184 = vmatpush1.bf16.msra.mxu0 %v174
  %185 = vmatprep.subr.bf16.mxu0 0
  %186 = vmatpush1.bf16.msra.mxu0 %v173
  %187 = vmatprep.subr.bf16.mxu0 0
  %188 = vmatpush1.bf16.msra.mxu0 %v172
  %189 = vmatprep.subr.bf16.mxu0 0
  %190 = vmatpush1.bf16.msra.mxu0 %v171
  %191 = vmatprep.subr.bf16.mxu0 0
  %192 = vmatpush1.bf16.msra.mxu0 %v170
  %193 = vmatprep.subr.bf16.mxu0 0
  %194 = vmatpush1.bf16.msra.mxu0 %v169
  %195 = vmatprep.subr.bf16.mxu0 0
  %196 = vmatpush1.bf16.msra.mxu0 %v168
  %197 = vmatprep.subr.bf16.mxu0 0
  %198 = vmatpush1.bf16.msra.mxu0 %v167
  %199 = vmatprep.subr.bf16.mxu0 0
  %200 = vmatpush2.bf16.msra.mxu0 0
  %201 = vmatprep.subr.bf16.mxu0 0
  %202 = vmatpush2.bf16.msra.mxu0 0
  %203 = vmatprep.subr.bf16.mxu0 0
  %204 = vmatpush2.bf16.msra.mxu0 0
  %205 = vmatprep.subr.bf16.mxu0 0
  %206 = vmatpush2.bf16.msra.mxu0 0
  %207 = vmatprep.subr.bf16.mxu0 0
  %208 = vmatpush2.bf16.msra.mxu0 0
  %209 = vmatprep.subr.bf16.mxu0 0
  %210 = vmatpush2.bf16.msra.mxu0 0
  %211 = vmatprep.subr.bf16.mxu0 0
  %212 = vmatpush2.bf16.msra.mxu0 0
  %213 = vmatprep.subr.bf16.mxu0 0
  %214 = vmatpush2.bf16.msra.mxu0 0
  %215 = vmatprep.mubr.bf16.mxu0 0
  %216 = vmatmul.mubr.bf16.gmra.mxu0 %v110
  %v217 = vpop.f32.mrf.mxu0
  %v218 = vadd.f32 %v133, %v217
  %v219 = vpop.f32.mrf.mxu0
  %v220 = vpop.f32.mrf.mxu0
  %v221 = vadd.f32 %v133, %v220
  %v222 = vpop.f32.mrf.mxu0
  %223 = vmatprep.mubr.bf16.mxu0 0
  %224 = vmatmul.mubr.bf16.gmra.mxu0 %v111
  %v225 = vpop.f32.mrf.mxu0
  %v226 = vadd.f32 %v133, %v225
  %v227 = vpop.f32.mrf.mxu0
  %v228 = vpop.f32.mrf.mxu0
  %v229 = vadd.f32 %v133, %v228
  %v230 = vpop.f32.mrf.mxu0
  %231 = vdwg.mxu0
  %vm232 = vcmask 130048
  %233 = vst.msk [vmem:[%s5] sm:$0xff] %vm232, %v218
  %234 = vst.msk [vmem:[%s5 + $0x8] sm:$0xff] %vm232, %v221
  %235 = vst.msk [vmem:[%s5 + $0x10] sm:$0xff] %vm232, %v226
  %236 = vst.msk [vmem:[%s5 + $0x18] sm:$0xff] %vm232, %v229
  // Predicated region
  $region22: #{tpu_custom_call.1} parent=0 // pred_check
    _
  $region23: #{tpu_custom_call.1} parent=0 // pred_check_branch
    %238 = sbr.rel (0) target = $region25
  $region24: #{tpu_custom_call.1} parent=0 // pred_region
    _
  $region25: #{tpu_custom_call.1} parent=0 // pred_fallthru
    _
  // Predicated region
  $region26: #{tpu_custom_call.1} parent=0 // pred_check
    _
  $region27: #{tpu_custom_call.1} parent=0 // pred_check_branch
    %240 = sbr.rel (0) target = $region29
  $region28: #{tpu_custom_call.1} parent=0 // pred_region
    _
  $region29: #{tpu_custom_call.1} parent=0 // pred_fallthru
    _

</llo_original>
